<compile_context>
chip_gen: v7x
topology: tpu7x:2x2x1
jax: 0.10.0
libtpu: 0.0.40
codegen_flags: <defaults>
</compile_context>

<pallas_src>
import jax
import jax.numpy as jnp
from jax.experimental import pallas as pl
from jax.experimental.pallas import tpu as pltpu


def _round_up(v, m):
    return ((v + m - 1) // m) * m


def _select_tiles(n):
    """Square node-tile size and padded node count."""
    n128 = _round_up(max(n, 1), 128)
    if n128 <= 256:
        tile = n128            # toy graphs: one grid step, everything VMEM-resident
    elif n128 >= 2048:
        tile = 512             # big graphs: fewer steps, still tiny VMEM footprint
    else:
        tile = 256             # fills the 256-wide MXU, keeps n_i >= 2 for v7x megacore
    return tile, _round_up(n, tile)


# ---------------------------------------------------------------------------
# Pass 1: feature transform  H = X @ W^T     (bf16 in, f32 MXU accumulate, bf16 out)
# ---------------------------------------------------------------------------
def feat_kernel(x_ref, w_ref, h_ref):
    h_ref[...] = jnp.dot(x_ref[...], w_ref[...],
                         preferred_element_type=jnp.float32).astype(h_ref.dtype)


def _feature_transform(x_p, w_p, tile):
    n_pad, in_pad = x_p.shape
    f_pad = w_p.shape[1]
    n_i = n_pad // tile
    cost = pl.CostEstimate(
        flops=2 * n_pad * in_pad * f_pad,
        transcendentals=0,
        bytes_accessed=2 * (x_p.size + w_p.size + n_pad * f_pad))
    return pl.pallas_call(
        feat_kernel,
        out_shape=jax.ShapeDtypeStruct((n_pad, f_pad), jnp.bfloat16),
        grid_spec=pltpu.PrefetchScalarGridSpec(
            num_scalar_prefetch=0,
            grid=(n_i,),
            in_specs=[
                pl.BlockSpec((tile, in_pad), lambda i: (i, 0)),    # X row tile
                pl.BlockSpec((in_pad, f_pad), lambda i: (0, 0)),   # W (VMEM-resident)
            ],
            out_specs=pl.BlockSpec((tile, f_pad), lambda i: (i, 0)),
        ),
        compiler_params=pltpu.CompilerParams(dimension_semantics=("parallel",)),
        cost_estimate=cost,
    )(x_p, w_p)


# ---------------------------------------------------------------------------
# Pass 2: aggregation  out = A_hat @ H + b   (bf16 in, f32 accumulator, f32 out)
# ---------------------------------------------------------------------------
def agg_kernel(a_ref, h_ref, b_ref, o_ref, acc_ref):
    k = pl.program_id(1)

    @pl.when(k == 0)
    def _init():
        # Bias folded into the accumulator init (saves a finalize broadcast+add).
        acc_ref[...] = jnp.broadcast_to(b_ref[...], acc_ref.shape)

    acc_ref[...] += jnp.dot(a_ref[...], h_ref[...],
                            preferred_element_type=jnp.float32)

    @pl.when(k == pl.num_programs(1) - 1)
    def _finalize():
        o_ref[...] = acc_ref[...].astype(o_ref.dtype)


def _aggregate(a_hat, h, b_p, tile):
    n_pad = a_hat.shape[0]
    f_pad = h.shape[1]
    n_i = n_pad // tile
    n_k = n_pad // tile
    cost = pl.CostEstimate(
        flops=2 * n_pad * n_pad * f_pad,
        transcendentals=0,
        bytes_accessed=(2 * a_hat.size + 2 * h.size * n_i
                        + 4 * n_pad * f_pad + 4 * b_p.size))
    # Explicit scoped-VMEM budget (double-buffered A/H/out tiles + f32 acc + bias);
    # kept well under v7x's 64 MiB physical VMEM.
    vmem_need = (2 * (tile * tile + tile * f_pad) * 2
                 + 2 * tile * f_pad * 4
                 + tile * f_pad * 4
                 + 2 * f_pad * 4)
    return pl.pallas_call(
        agg_kernel,
        out_shape=jax.ShapeDtypeStruct((n_pad, f_pad), jnp.float32),
        grid_spec=pltpu.PrefetchScalarGridSpec(
            num_scalar_prefetch=0,
            grid=(n_i, n_k),
            in_specs=[
                pl.BlockSpec((tile, tile), lambda i, k: (i, k)),    # A_hat tile
                pl.BlockSpec((tile, f_pad), lambda i, k: (k, 0)),   # H source tile
                pl.BlockSpec((1, f_pad), lambda i, k: (0, 0)),      # bias (resident)
            ],
            out_specs=pl.BlockSpec((tile, f_pad), lambda i, k: (i, 0)),  # acc over k
            scratch_shapes=[pltpu.VMEM((tile, f_pad), jnp.float32)],
        ),
        compiler_params=pltpu.CompilerParams(
            dimension_semantics=("parallel", "arbitrary"),
            vmem_limit_bytes=int(min(max(2 * vmem_need, 32 * 1024 * 1024),
                                     48 * 1024 * 1024)),
        ),
        cost_estimate=cost,
    )(a_hat, h, b_p)


def _normalized_adjacency(edge_index, num_nodes, n_pad):
    """A_hat = D^{-1/2} (A + I) D^{-1/2}, built directly at padded size, bf16.

    Matches PyG gcn_norm / add_remaining_self_loops with unit edge weights: each edge
    (src -> dst) adds 1 to A[dst, src] (duplicates accumulate); explicit self-loop
    edges are collapsed to a single unit self-loop and every real node gets one.
    Padded rows/cols stay zero (deg 0 -> norm 0), so padding never leaks into real rows.
    """
    # TODO(synk): the edge_index scatter stays in plain XLA; an arbitrary-index scatter
    # has no clean tiled-Pallas equivalent at this problem size (CSR/edge-block
    # formulation with scalar-prefetched row offsets would be the sparse path).
    src, dst = edge_index[0], edge_index[1]
    a = jnp.zeros((n_pad, n_pad), jnp.float32)
    a = a.at[dst, src].add(1.0)
    real = jnp.arange(n_pad) < num_nodes
    eye = jnp.eye(n_pad, dtype=bool) & real[None, :]
    a = jnp.where(eye, 1.0, a)                       # unit self-loop on real nodes
    deg = jnp.sum(a, axis=1)                         # in-degree incl. self-loop
    d_inv_sqrt = jnp.where(deg > 0.0, jax.lax.rsqrt(deg), 0.0)
    return (d_inv_sqrt[:, None] * a * d_inv_sqrt[None, :]).astype(jnp.bfloat16)


@jax.jit
def gcn_layer_forward(x, edge_index, weight, bias):
    """GCNLayer.forward semantics: GCNConv(x, edge_index).
    x: (N, in) f32, edge_index: (2, E) int32, weight: (out, in) f32, bias: (out,) f32."""
    n, in_dim = x.shape
    f_out = weight.shape[0]
    tile, n_pad = _select_tiles(n)
    in_pad = _round_up(in_dim, 128)
    f_pad = _round_up(f_out, 128)

    a_hat = _normalized_adjacency(edge_index, n, n_pad)                 # (n_pad,n_pad) bf16
    x_p = jnp.zeros((n_pad, in_pad), jnp.bfloat16).at[:n, :in_dim].set(
        x.astype(jnp.bfloat16))
    w_p = jnp.zeros((in_pad, f_pad), jnp.bfloat16).at[:in_dim, :f_out].set(
        weight.T.astype(jnp.bfloat16))
    b_p = jnp.zeros((1, f_pad), jnp.float32).at[0, :f_out].set(bias)

    h = _feature_transform(x_p, w_p, tile)                              # (n_pad,f_pad) bf16
    out = _aggregate(a_hat, h, b_p, tile)                               # (n_pad,f_pad) f32
    return out[:n, :f_out]


if __name__ == "__main__":
    key = jax.random.PRNGKey(0)
    k_x, k_w, k_b, k_s, k_d = jax.random.split(key, 5)

    num_nodes, in_channels, hidden_channels = 200, 16, 32
    num_edges = 600

    src = jax.random.randint(k_s, (num_edges,), 0, num_nodes)
    dst = jax.random.randint(k_d, (num_edges,), 0, num_nodes)
    edge_index = jnp.stack([src, dst]).astype(jnp.int32)

    # PyTorch-Linear-like deterministic init (uniform +-1/sqrt(in_channels)).
    bound = 1.0 / (in_channels ** 0.5)
    weight = jax.random.uniform(k_w, (hidden_channels, in_channels),
                                jnp.float32, -bound, bound)
    bias = jax.random.uniform(k_b, (hidden_channels,), jnp.float32, -bound, bound)
    x = jax.random.normal(k_x, (num_nodes, in_channels), jnp.float32)

    out = gcn_layer_forward(x, edge_index, weight, bias)
    jax.block_until_ready(out)

    # Pure-JAX full-precision f32 reference of the same GCNConv math.
    a = jnp.zeros((num_nodes, num_nodes), jnp.float32).at[dst, src].add(1.0)
    eye = jnp.eye(num_nodes, dtype=bool)
    a = jnp.where(eye, 1.0, a)
    deg = jnp.sum(a, axis=1)
    dis = jnp.where(deg > 0.0, jax.lax.rsqrt(deg), 0.0)
    a_hat_ref = dis[:, None] * a * dis[None, :]
    h_ref = jnp.dot(x, weight.T, precision=jax.lax.Precision.HIGHEST)
    ref = jnp.dot(a_hat_ref, h_ref, precision=jax.lax.Precision.HIGHEST) + bias[None, :]

    assert out.shape == (num_nodes, hidden_channels)
    # Kernel feeds the MXU bf16 operands (f32 accumulation) -> bf16-level tolerance.
    err = float(jnp.max(jnp.abs(out - ref)))
    assert bool(jnp.allclose(out, ref, rtol=2e-2, atol=2e-2)), err
    print("KERNEL_OK")
</pallas_src>

<mosaic_0001>
module attributes {stable_mosaic.version = 11 : i64} {
  func.func @agg_kernel(%arg0: i32, %arg1: i32, %arg2: memref<256x256xbf16, #tpu.memory_space<vmem>>, %arg3: memref<256x128xbf16, #tpu.memory_space<vmem>>, %arg4: memref<1x128xf32, #tpu.memory_space<vmem>>, %arg5: memref<256x128xf32, #tpu.memory_space<vmem>>, %arg6: memref<256x128xf32, #tpu.memory_space<vmem>>) attributes {dimension_semantics = [#tpu.dimension_semantics<parallel>, #tpu.dimension_semantics<arbitrary>], iteration_bounds = array<i64: 1, 1>, scalar_prefetch = 0 : i64, scratch_operands = 1 : i64, tpu.core_type = #tpu.core_type<tc>, window_params = [{transform_indices = @transform_0, window_bounds = array<i64: 256, 256>}, {transform_indices = @transform_1, window_bounds = array<i64: 256, 128>}, {pipeline_mode = #tpu.pipeline_mode<synchronous>, transform_indices = @transform_2, window_bounds = array<i64: 1, 128>}, {transform_indices = @transform_3, window_bounds = array<i64: 256, 128>}]} {
    %c0_i32 = arith.constant 0 : i32
    %0 = arith.cmpi eq, %arg1, %c0_i32 : i32
    %1 = arith.extui %0 : i1 to i32
    %c0_i32_0 = arith.constant 0 : i32
    %2 = arith.cmpi ne, %1, %c0_i32_0 : i32
    scf.if %2 {
      %c0_10 = arith.constant 0 : index
      %c0_11 = arith.constant 0 : index
      %12 = vector.load %arg4[%c0_10, %c0_11] : memref<1x128xf32, #tpu.memory_space<vmem>>, vector<1x128xf32>
      %13 = vector.shape_cast %12 : vector<1x128xf32> to vector<1x128xf32>
      %14 = vector.broadcast %13 : vector<1x128xf32> to vector<256x128xf32>
      %c0_12 = arith.constant 0 : index
      %c0_13 = arith.constant 0 : index
      %15 = vector.load %arg6[%c0_12, %c0_13] : memref<256x128xf32, #tpu.memory_space<vmem>>, vector<256x128xf32>
      tpu.vector_store %arg6[%c0_12, %c0_13], %14 {strides = array<i32>} : memref<256x128xf32, #tpu.memory_space<vmem>>, vector<256x128xf32>,
    } else {
    }
    %c0 = arith.constant 0 : index
    %c0_1 = arith.constant 0 : index
    %3 = vector.load %arg6[%c0, %c0_1] : memref<256x128xf32, #tpu.memory_space<vmem>>, vector<256x128xf32>
    %c0_2 = arith.constant 0 : index
    %c0_3 = arith.constant 0 : index
    %4 = vector.load %arg2[%c0_2, %c0_3] : memref<256x256xbf16, #tpu.memory_space<vmem>>, vector<256x256xbf16>
    %c0_4 = arith.constant 0 : index
    %c0_5 = arith.constant 0 : index
    %5 = vector.load %arg3[%c0_4, %c0_5] : memref<256x128xbf16, #tpu.memory_space<vmem>>, vector<256x128xbf16>
    %cst = arith.constant dense<0.000000e+00> : vector<256x128xf32>
    %6 = tpu.matmul %4, %5, %cst {dimension_numbers = #tpu.dot_dimension_numbers<[1], [0], [0], [1], [0, 0, 1, 1], [], []>} : vector<256x256xbf16>, vector<256x128xbf16>, vector<256x128xf32> -> vector<256x128xf32>
    %7 = arith.addf %3, %6 : vector<256x128xf32>
    %c0_6 = arith.constant 0 : index
    %c0_7 = arith.constant 0 : index
    %8 = vector.load %arg6[%c0_6, %c0_7] : memref<256x128xf32, #tpu.memory_space<vmem>>, vector<256x128xf32>
    tpu.vector_store %arg6[%c0_6, %c0_7], %7 {strides = array<i32>} : memref<256x128xf32, #tpu.memory_space<vmem>>, vector<256x128xf32>,
    %c0_i32_8 = arith.constant 0 : i32
    %9 = arith.cmpi eq, %arg1, %c0_i32_8 : i32
    %10 = arith.extui %9 : i1 to i32
    %c0_i32_9 = arith.constant 0 : i32
    %11 = arith.cmpi ne, %10, %c0_i32_9 : i32
    scf.if %11 {
      %c0_10 = arith.constant 0 : index
      %c0_11 = arith.constant 0 : index
      %12 = vector.load %arg6[%c0_10, %c0_11] : memref<256x128xf32, #tpu.memory_space<vmem>>, vector<256x128xf32>
      %c0_12 = arith.constant 0 : index
      %c0_13 = arith.constant 0 : index
      %13 = vector.load %arg5[%c0_12, %c0_13] : memref<256x128xf32, #tpu.memory_space<vmem>>, vector<256x128xf32>
      tpu.vector_store %arg5[%c0_12, %c0_13], %12 {strides = array<i32>} : memref<256x128xf32, #tpu.memory_space<vmem>>, vector<256x128xf32>,
    } else {
    }
    return
  }
  func.func @transform_0(%arg0: i32, %arg1: i32) -> (i32, i32) {
    %c0_i32 = arith.constant 0 : i32
    return %arg0, %arg1 : i32, i32
  }
  func.func @transform_1(%arg0: i32, %arg1: i32) -> (i32, i32) {
    %c0_i32 = arith.constant 0 : i32
    %c0_i32_0 = arith.constant 0 : i32
    return %arg1, %c0_i32 : i32, i32
  }
  func.func @transform_2(%arg0: i32, %arg1: i32) -> (i32, i32) {
    %c0_i32 = arith.constant 0 : i32
    %c0_i32_0 = arith.constant 0 : i32
    %c0_i32_1 = arith.constant 0 : i32
    return %c0_i32, %c0_i32_0 : i32, i32
  }
  func.func @transform_3(%arg0: i32, %arg1: i32) -> (i32, i32) {
    %c0_i32 = arith.constant 0 : i32
    %c0_i32_0 = arith.constant 0 : i32
    return %arg0, %c0_i32 : i32, i32
  }
}

module attributes {stable_mosaic.version = 11 : i64} {
  func.func @feat_kernel(%arg0: i32, %arg1: memref<256x128xbf16, #tpu.memory_space<vmem>>, %arg2: memref<128x128xbf16, #tpu.memory_space<vmem>>, %arg3: memref<256x128xbf16, #tpu.memory_space<vmem>>) attributes {dimension_semantics = [#tpu.dimension_semantics<parallel>], iteration_bounds = array<i64: 1>, scalar_prefetch = 0 : i64, scratch_operands = 0 : i64, tpu.core_type = #tpu.core_type<tc>, window_params = [{transform_indices = @transform_0, window_bounds = array<i64: 256, 128>}, {pipeline_mode = #tpu.pipeline_mode<synchronous>, transform_indices = @transform_1, window_bounds = array<i64: 128, 128>}, {transform_indices = @transform_2, window_bounds = array<i64: 256, 128>}]} {
    %c0 = arith.constant 0 : index
    %c0_0 = arith.constant 0 : index
    %0 = vector.load %arg1[%c0, %c0_0] : memref<256x128xbf16, #tpu.memory_space<vmem>>, vector<256x128xbf16>
    %c0_1 = arith.constant 0 : index
    %c0_2 = arith.constant 0 : index
    %1 = vector.load %arg2[%c0_1, %c0_2] : memref<128x128xbf16, #tpu.memory_space<vmem>>, vector<128x128xbf16>
    %cst = arith.constant dense<0.000000e+00> : vector<256x128xf32>
    %2 = tpu.matmul %0, %1, %cst {dimension_numbers = #tpu.dot_dimension_numbers<[1], [0], [0], [1], [0, 0, 1, 1], [], []>} : vector<256x128xbf16>, vector<128x128xbf16>, vector<256x128xf32> -> vector<256x128xf32>
    %3 = arith.truncf %2 : vector<256x128xf32> to vector<256x128xbf16>
    %c0_3 = arith.constant 0 : index
    %c0_4 = arith.constant 0 : index
    %4 = vector.load %arg3[%c0_3, %c0_4] : memref<256x128xbf16, #tpu.memory_space<vmem>>, vector<256x128xbf16>
    tpu.vector_store %arg3[%c0_3, %c0_4], %3 {strides = array<i32>} : memref<256x128xbf16, #tpu.memory_space<vmem>>, vector<256x128xbf16>,
    return
  }
  func.func @transform_0(%arg0: i32) -> (i32, i32) {
    %c0_i32 = arith.constant 0 : i32
    %c0_i32_0 = arith.constant 0 : i32
    return %arg0, %c0_i32 : i32, i32
  }
  func.func @transform_1(%arg0: i32) -> (i32, i32) {
    %c0_i32 = arith.constant 0 : i32
    %c0_i32_0 = arith.constant 0 : i32
    %c0_i32_1 = arith.constant 0 : i32
    return %c0_i32, %c0_i32_0 : i32, i32
  }
  func.func @transform_2(%arg0: i32) -> (i32, i32) {
    %c0_i32 = arith.constant 0 : i32
    %c0_i32_0 = arith.constant 0 : i32
    return %arg0, %c0_i32 : i32, i32
  }
}

</mosaic_0001>

<llo_original>
// kernel: gcn_layer_forward.3
$region0: #{gcn_layer_forward.3}
  #allocation0 [shape = 'u32[]', space=smem, size = 0x4, offset = 0x4, fixed_abs, tag = 'smem constant byte address 0x4 - core index']
  #allocation1 [shape = 'u32[144,128]{1,0:T(1,128)}', space=vmem, size = 0x12000, scoped, tag = 'internal scratch']
  #allocation2 [shape = 'f32[256,128]{1,0:T(8,128)}', space=vmem, size = 0x20000, scoped, tag = 'scratch operand']
  %s0 = inlined_call_operand.vmem [shape: bf16[256,256], index: 0, kind: input, shape index: {}]
  %s1 = inlined_call_operand.vmem [shape: bf16[256,128], index: 1, kind: input, shape index: {}]
  %s2 = inlined_call_operand.vmem [shape: f32[1,128], index: 2, kind: input, shape index: {}]
  %s3 = inlined_call_operand.vmem [shape: f32[256,128], index: 3, kind: output, shape index: {}]
  %s4 = sld [smem:[#allocation0]]
  $region30: #{gcn_layer_forward.3} parent=0
    _
  %s6 = ssub.s32 1, %s4
  %s7 = scalar_select 0, %s6, %s4
  // Predicated region
  $region2: #{gcn_layer_forward.3} parent=0 // pred_check
    _
  $region3: #{gcn_layer_forward.3} parent=0 // pred_check_branch
    %9 = sbr.rel (0) target = $region5
  $region4: #{gcn_layer_forward.3} parent=0 // pred_region
    _
  $region5: #{gcn_layer_forward.3} parent=0 // pred_fallthru
    _
  // Predicated region
  $region6: #{gcn_layer_forward.3} parent=0 // pred_check
    _
  $region7: #{gcn_layer_forward.3} parent=0 // pred_check_branch
    %11 = sbr.rel (0) target = $region9
  $region8: #{gcn_layer_forward.3} parent=0 // pred_region
    _
  $region9: #{gcn_layer_forward.3} parent=0 // pred_fallthru
    _
  // Predicated region
  $region10: #{gcn_layer_forward.3} parent=0 // pred_check
    _
  $region11: #{gcn_layer_forward.3} parent=0 // pred_check_branch
    %13 = sbr.rel (0) target = $region13
  $region12: #{gcn_layer_forward.3} parent=0 // pred_region
    _
  $region13: #{gcn_layer_forward.3} parent=0 // pred_fallthru
    _
  %p15 = scmp.eq.s32.totalorder 0, 0
  // Predicated region
  $region14: #{gcn_layer_forward.3} parent=0 // pred_check
    %p16 = pneg %p15
  $region15: #{gcn_layer_forward.3} parent=0 // pred_check_branch
    %18 = sbr.rel (%p16) target = $region17
  $region16: #{gcn_layer_forward.3} parent=0 // pred_region
    %v19 = vld [vmem:[%s2] sm:$0x1]
    %v21 = vlaneseq
    %v22 = vshrl.u32 %v21, 7
    %v23 = vsub.s32 0, %v22
    %v24 = vrot.slane %v19, %v23
    %26 = vst [vmem:[#allocation2] sm:$0xff] %v24
    %27 = vst [vmem:[#allocation2 + $0x8] sm:$0xff] %v24
    %28 = vst [vmem:[#allocation2 + $0x10] sm:$0xff] %v24
    %29 = vst [vmem:[#allocation2 + $0x18] sm:$0xff] %v24
    %30 = vst [vmem:[#allocation2 + $0x20] sm:$0xff] %v24
    %31 = vst [vmem:[#allocation2 + $0x28] sm:$0xff] %v24
    %32 = vst [vmem:[#allocation2 + $0x30] sm:$0xff] %v24
    %33 = vst [vmem:[#allocation2 + $0x38] sm:$0xff] %v24
    %34 = vst [vmem:[#allocation2 + $0x40] sm:$0xff] %v24
    %35 = vst [vmem:[#allocation2 + $0x48] sm:$0xff] %v24
    %36 = vst [vmem:[#allocation2 + $0x50] sm:$0xff] %v24
    %37 = vst [vmem:[#allocation2 + $0x58] sm:$0xff] %v24
    %38 = vst [vmem:[#allocation2 + $0x60] sm:$0xff] %v24
    %39 = vst [vmem:[#allocation2 + $0x68] sm:$0xff] %v24
    %40 = vst [vmem:[#allocation2 + $0x70] sm:$0xff] %v24
    %41 = vst [vmem:[#allocation2 + $0x78] sm:$0xff] %v24
    %42 = vst [vmem:[#allocation2 + $0x80] sm:$0xff] %v24
    %43 = vst [vmem:[#allocation2 + $0x88] sm:$0xff] %v24
    %44 = vst [vmem:[#allocation2 + $0x90] sm:$0xff] %v24
    %45 = vst [vmem:[#allocation2 + $0x98] sm:$0xff] %v24
    %46 = vst [vmem:[#allocation2 + $0xa0] sm:$0xff] %v24
    %47 = vst [vmem:[#allocation2 + $0xa8] sm:$0xff] %v24
    %48 = vst [vmem:[#allocation2 + $0xb0] sm:$0xff] %v24
    %49 = vst [vmem:[#allocation2 + $0xb8] sm:$0xff] %v24
    %50 = vst [vmem:[#allocation2 + $0xc0] sm:$0xff] %v24
    %51 = vst [vmem:[#allocation2 + $0xc8] sm:$0xff] %v24
    %52 = vst [vmem:[#allocation2 + $0xd0] sm:$0xff] %v24
    %53 = vst [vmem:[#allocation2 + $0xd8] sm:$0xff] %v24
    %54 = vst [vmem:[#allocation2 + $0xe0] sm:$0xff] %v24
    %55 = vst [vmem:[#allocation2 + $0xe8] sm:$0xff] %v24
    %56 = vst [vmem:[#allocation2 + $0xf0] sm:$0xff] %v24
    %57 = vst [vmem:[#allocation2 + $0xf8] sm:$0xff] %v24
  $region17: #{gcn_layer_forward.3} parent=0 // pred_fallthru
    _
  %v58 = vld [vmem:[#allocation2] sm:$0xff]
  %v59 = vld [vmem:[#allocation2 + $0x8] sm:$0xff]
  %v60 = vld [vmem:[#allocation2 + $0x10] sm:$0xff]
  %v61 = vld [vmem:[#allocation2 + $0x18] sm:$0xff]
  %v62 = vld [vmem:[#allocation2 + $0x20] sm:$0xff]
  %v63 = vld [vmem:[#allocation2 + $0x28] sm:$0xff]
  %v64 = vld [vmem:[#allocation2 + $0x30] sm:$0xff]
  %v65 = vld [vmem:[#allocation2 + $0x38] sm:$0xff]
  %v66 = vld [vmem:[#allocation2 + $0x40] sm:$0xff]
  %v67 = vld [vmem:[#allocation2 + $0x48] sm:$0xff]
  %v68 = vld [vmem:[#allocation2 + $0x50] sm:$0xff]
  %v69 = vld [vmem:[#allocation2 + $0x58] sm:$0xff]
  %v70 = vld [vmem:[#allocation2 + $0x60] sm:$0xff]
  %v71 = vld [vmem:[#allocation2 + $0x68] sm:$0xff]
  %v72 = vld [vmem:[#allocation2 + $0x70] sm:$0xff]
  %v73 = vld [vmem:[#allocation2 + $0x78] sm:$0xff]
  %v74 = vld [vmem:[#allocation2 + $0x80] sm:$0xff]
  %v75 = vld [vmem:[#allocation2 + $0x88] sm:$0xff]
  %v76 = vld [vmem:[#allocation2 + $0x90] sm:$0xff]
  %v77 = vld [vmem:[#allocation2 + $0x98] sm:$0xff]
  %v78 = vld [vmem:[#allocation2 + $0xa0] sm:$0xff]
  %v79 = vld [vmem:[#allocation2 + $0xa8] sm:$0xff]
  %v80 = vld [vmem:[#allocation2 + $0xb0] sm:$0xff]
  %v81 = vld [vmem:[#allocation2 + $0xb8] sm:$0xff]
  %v82 = vld [vmem:[#allocation2 + $0xc0] sm:$0xff]
  %v83 = vld [vmem:[#allocation2 + $0xc8] sm:$0xff]
  %v84 = vld [vmem:[#allocation2 + $0xd0] sm:$0xff]
  %v85 = vld [vmem:[#allocation2 + $0xd8] sm:$0xff]
  %v86 = vld [vmem:[#allocation2 + $0xe0] sm:$0xff]
  %v87 = vld [vmem:[#allocation2 + $0xe8] sm:$0xff]
  %v88 = vld [vmem:[#allocation2 + $0xf0] sm:$0xff]
  %v89 = vld [vmem:[#allocation2 + $0xf8] sm:$0xff]
  %v90 = vld [vmem:[%s0] sm:$0xff]
  %v91 = vld [vmem:[%s0 + $0x8] sm:$0xff]
  %v92 = vld [vmem:[%s0 + $0x10] sm:$0xff]
  %v93 = vld [vmem:[%s0 + $0x18] sm:$0xff]
  %v94 = vld [vmem:[%s0 + $0x20] sm:$0xff]
  %v95 = vld [vmem:[%s0 + $0x28] sm:$0xff]
  %v96 = vld [vmem:[%s0 + $0x30] sm:$0xff]
  %v97 = vld [vmem:[%s0 + $0x38] sm:$0xff]
  %v98 = vld [vmem:[%s0 + $0x40] sm:$0xff]
  %v99 = vld [vmem:[%s0 + $0x48] sm:$0xff]
  %v100 = vld [vmem:[%s0 + $0x50] sm:$0xff]
  %v101 = vld [vmem:[%s0 + $0x58] sm:$0xff]
  %v102 = vld [vmem:[%s0 + $0x60] sm:$0xff]
  %v103 = vld [vmem:[%s0 + $0x68] sm:$0xff]
  %v104 = vld [vmem:[%s0 + $0x70] sm:$0xff]
  %v105 = vld [vmem:[%s0 + $0x78] sm:$0xff]
  %v106 = vld [vmem:[%s0 + $0x80] sm:$0xff]
  %v107 = vld [vmem:[%s0 + $0x88] sm:$0xff]
  %v108 = vld [vmem:[%s0 + $0x90] sm:$0xff]
  %v109 = vld [vmem:[%s0 + $0x98] sm:$0xff]
  %v110 = vld [vmem:[%s0 + $0xa0] sm:$0xff]
  %v111 = vld [vmem:[%s0 + $0xa8] sm:$0xff]
  %v112 = vld [vmem:[%s0 + $0xb0] sm:$0xff]
  %v113 = vld [vmem:[%s0 + $0xb8] sm:$0xff]
  %v114 = vld [vmem:[%s0 + $0xc0] sm:$0xff]
  %v115 = vld [vmem:[%s0 + $0xc8] sm:$0xff]
  %v116 = vld [vmem:[%s0 + $0xd0] sm:$0xff]
  %v117 = vld [vmem:[%s0 + $0xd8] sm:$0xff]
  %v118 = vld [vmem:[%s0 + $0xe0] sm:$0xff]
  %v119 = vld [vmem:[%s0 + $0xe8] sm:$0xff]
  %v120 = vld [vmem:[%s0 + $0xf0] sm:$0xff]
  %v121 = vld [vmem:[%s0 + $0xf8] sm:$0xff]
  %v122 = vld [vmem:[%s1] sm:$0xf]
  %v123 = vld [vmem:[%s1 + $0x4] sm:$0xf]
  %v124 = vld [vmem:[%s1 + $0x8] sm:$0xf]
  %v125 = vld [vmem:[%s1 + $0xc] sm:$0xf]
  %v126 = vld [vmem:[%s1 + $0x10] sm:$0xf]
  %v127 = vld [vmem:[%s1 + $0x14] sm:$0xf]
  %v128 = vld [vmem:[%s1 + $0x18] sm:$0xf]
  %v129 = vld [vmem:[%s1 + $0x1c] sm:$0xf]
  %v130 = vld [vmem:[%s1 + $0x20] sm:$0xf]
  %v131 = vld [vmem:[%s1 + $0x24] sm:$0xf]
  %v132 = vld [vmem:[%s1 + $0x28] sm:$0xf]
  %v133 = vld [vmem:[%s1 + $0x2c] sm:$0xf]
  %v134 = vld [vmem:[%s1 + $0x30] sm:$0xf]
  %v135 = vld [vmem:[%s1 + $0x34] sm:$0xf]
  %v136 = vld [vmem:[%s1 + $0x38] sm:$0xf]
  %v137 = vld [vmem:[%s1 + $0x3c] sm:$0xf]
  %v138 = vld [vmem:[%s1 + $0x40] sm:$0xf]
  %v139 = vld [vmem:[%s1 + $0x44] sm:$0xf]
  %v140 = vld [vmem:[%s1 + $0x48] sm:$0xf]
  %v141 = vld [vmem:[%s1 + $0x4c] sm:$0xf]
  %v142 = vld [vmem:[%s1 + $0x50] sm:$0xf]
  %v143 = vld [vmem:[%s1 + $0x54] sm:$0xf]
  %v144 = vld [vmem:[%s1 + $0x58] sm:$0xf]
  %v145 = vld [vmem:[%s1 + $0x5c] sm:$0xf]
  %v146 = vld [vmem:[%s1 + $0x60] sm:$0xf]
  %v147 = vld [vmem:[%s1 + $0x64] sm:$0xf]
  %v148 = vld [vmem:[%s1 + $0x68] sm:$0xf]
  %v149 = vld [vmem:[%s1 + $0x6c] sm:$0xf]
  %v150 = vld [vmem:[%s1 + $0x70] sm:$0xf]
  %v151 = vld [vmem:[%s1 + $0x74] sm:$0xf]
  %v152 = vld [vmem:[%s1 + $0x78] sm:$0xf]
  %v153 = vld [vmem:[%s1 + $0x7c] sm:$0xf]
  %v186 = vunpack.c.l.b16 %v90
  %v187 = vunpack.c.h.b16 %v90
  %v188 = vunpack.c.l.b16 %v91
  %v189 = vunpack.c.h.b16 %v91
  %v190 = vunpack.c.l.b16 %v92
  %v191 = vunpack.c.h.b16 %v92
  %v192 = vunpack.c.l.b16 %v93
  %v193 = vunpack.c.h.b16 %v93
  %v194 = vunpack.c.l.b16 %v94
  %v195 = vunpack.c.h.b16 %v94
  %v196 = vunpack.c.l.b16 %v95
  %v197 = vunpack.c.h.b16 %v95
  %v198 = vunpack.c.l.b16 %v96
  %v199 = vunpack.c.h.b16 %v96
  %v200 = vunpack.c.l.b16 %v97
  %v201 = vunpack.c.h.b16 %v97
  %v202 = vunpack.c.l.b16 %v98
  %v203 = vunpack.c.h.b16 %v98
  %v204 = vunpack.c.l.b16 %v99
  %v205 = vunpack.c.h.b16 %v99
  %v206 = vunpack.c.l.b16 %v100
  %v207 = vunpack.c.h.b16 %v100
  %v208 = vunpack.c.l.b16 %v101
  %v209 = vunpack.c.h.b16 %v101
  %v210 = vunpack.c.l.b16 %v102
  %v211 = vunpack.c.h.b16 %v102
  %v212 = vunpack.c.l.b16 %v103
  %v213 = vunpack.c.h.b16 %v103
  %v214 = vunpack.c.l.b16 %v104
  %v215 = vunpack.c.h.b16 %v104
  %v216 = vunpack.c.l.b16 %v105
  %v217 = vunpack.c.h.b16 %v105
  %v218 = vunpack.c.l.b16 %v106
  %v219 = vunpack.c.h.b16 %v106
  %v220 = vunpack.c.l.b16 %v107
  %v221 = vunpack.c.h.b16 %v107
  %v222 = vunpack.c.l.b16 %v108
  %v223 = vunpack.c.h.b16 %v108
  %v224 = vunpack.c.l.b16 %v109
  %v225 = vunpack.c.h.b16 %v109
  %v226 = vunpack.c.l.b16 %v110
  %v227 = vunpack.c.h.b16 %v110
  %v228 = vunpack.c.l.b16 %v111
  %v229 = vunpack.c.h.b16 %v111
  %v230 = vunpack.c.l.b16 %v112
  %v231 = vunpack.c.h.b16 %v112
  %v232 = vunpack.c.l.b16 %v113
  %v233 = vunpack.c.h.b16 %v113
  %v234 = vunpack.c.l.b16 %v114
  %v235 = vunpack.c.h.b16 %v114
  %v236 = vunpack.c.l.b16 %v115
  %v237 = vunpack.c.h.b16 %v115
  %v238 = vunpack.c.l.b16 %v116
  %v239 = vunpack.c.h.b16 %v116
  %v240 = vunpack.c.l.b16 %v117
  %v241 = vunpack.c.h.b16 %v117
  %v242 = vunpack.c.l.b16 %v118
  %v243 = vunpack.c.h.b16 %v118
  %v244 = vunpack.c.l.b16 %v119
  %v245 = vunpack.c.h.b16 %v119
  %v246 = vunpack.c.l.b16 %v120
  %v247 = vunpack.c.h.b16 %v120
  %v248 = vunpack.c.l.b16 %v121
  %v249 = vunpack.c.h.b16 %v121
  %v250 = vpack.c.b16 %v188, %v186
  %v251 = vpack.c.b16 %v189, %v187
  %v252 = vpack.c.b16 %v192, %v190
  %v253 = vpack.c.b16 %v193, %v191
  %v254 = vpack.c.b16 %v196, %v194
  %v255 = vpack.c.b16 %v197, %v195
  %v256 = vpack.c.b16 %v200, %v198
  %v257 = vpack.c.b16 %v201, %v199
  %v258 = vpack.c.b16 %v204, %v202
  %v259 = vpack.c.b16 %v205, %v203
  %v260 = vpack.c.b16 %v208, %v206
  %v261 = vpack.c.b16 %v209, %v207
  %v262 = vpack.c.b16 %v212, %v210
  %v263 = vpack.c.b16 %v213, %v211
  %v264 = vpack.c.b16 %v216, %v214
  %v265 = vpack.c.b16 %v217, %v215
  %v266 = vpack.c.b16 %v220, %v218
  %v267 = vpack.c.b16 %v221, %v219
  %v268 = vpack.c.b16 %v224, %v222
  %v269 = vpack.c.b16 %v225, %v223
  %v270 = vpack.c.b16 %v228, %v226
  %v271 = vpack.c.b16 %v229, %v227
  %v272 = vpack.c.b16 %v232, %v230
  %v273 = vpack.c.b16 %v233, %v231
  %v274 = vpack.c.b16 %v236, %v234
  %v275 = vpack.c.b16 %v237, %v235
  %v276 = vpack.c.b16 %v240, %v238
  %v277 = vpack.c.b16 %v241, %v239
  %v278 = vpack.c.b16 %v244, %v242
  %v279 = vpack.c.b16 %v245, %v243
  %v280 = vpack.c.b16 %v248, %v246
  %v281 = vpack.c.b16 %v249, %v247
  %v346 = vunpack.c.l.b16 %v122
  %v347 = vunpack.c.l.b16 %v123
  %v348 = vunpack.c.l.b16 %v124
  %v349 = vunpack.c.l.b16 %v125
  %v350 = vunpack.c.l.b16 %v126
  %v351 = vunpack.c.l.b16 %v127
  %v352 = vunpack.c.l.b16 %v128
  %v353 = vunpack.c.l.b16 %v129
  %v354 = vunpack.c.l.b16 %v130
  %v355 = vunpack.c.l.b16 %v131
  %v356 = vunpack.c.l.b16 %v132
  %v357 = vunpack.c.l.b16 %v133
  %v358 = vunpack.c.l.b16 %v134
  %v359 = vunpack.c.l.b16 %v135
  %v360 = vunpack.c.l.b16 %v136
  %v361 = vunpack.c.l.b16 %v137
  %v362 = vunpack.c.l.b16 %v138
  %v363 = vunpack.c.l.b16 %v139
  %v364 = vunpack.c.l.b16 %v140
  %v365 = vunpack.c.l.b16 %v141
  %v366 = vunpack.c.l.b16 %v142
  %v367 = vunpack.c.l.b16 %v143
  %v368 = vunpack.c.l.b16 %v144
  %v369 = vunpack.c.l.b16 %v145
  %v370 = vunpack.c.l.b16 %v146
  %v371 = vunpack.c.l.b16 %v147
  %v372 = vunpack.c.l.b16 %v148
  %v373 = vunpack.c.l.b16 %v149
  %v374 = vunpack.c.l.b16 %v150
  %v375 = vunpack.c.l.b16 %v151
  %v376 = vunpack.c.l.b16 %v152
  %v377 = vunpack.c.l.b16 %v153
  %v378 = vpack.c.b16 %v347, %v346
  %v379 = vpack.c.b16 %v349, %v348
  %v380 = vpack.c.b16 %v351, %v350
  %v381 = vpack.c.b16 %v353, %v352
  %v382 = vpack.c.b16 %v355, %v354
  %v383 = vpack.c.b16 %v357, %v356
  %v384 = vpack.c.b16 %v359, %v358
  %v385 = vpack.c.b16 %v361, %v360
  %v386 = vpack.c.b16 %v363, %v362
  %v387 = vpack.c.b16 %v365, %v364
  %v388 = vpack.c.b16 %v367, %v366
  %v389 = vpack.c.b16 %v369, %v368
  %v390 = vpack.c.b16 %v371, %v370
  %v391 = vpack.c.b16 %v373, %v372
  %v392 = vpack.c.b16 %v375, %v374
  %v393 = vpack.c.b16 %v377, %v376
  %410 = vmatprep.subr.bf16.mxu0 0
  %411 = vmatpush1.bf16.msra.mxu0 %v378
  %412 = vmatprep.subr.bf16.mxu0 0
  %413 = vmatpush1.bf16.msra.mxu0 %v379
  %414 = vmatprep.subr.bf16.mxu0 0
  %415 = vmatpush1.bf16.msra.mxu0 %v380
  %416 = vmatprep.subr.bf16.mxu0 0
  %417 = vmatpush1.bf16.msra.mxu0 %v381
  %418 = vmatprep.subr.bf16.mxu0 0
  %419 = vmatpush1.bf16.msra.mxu0 %v382
  %420 = vmatprep.subr.bf16.mxu0 0
  %421 = vmatpush1.bf16.msra.mxu0 %v383
  %422 = vmatprep.subr.bf16.mxu0 0
  %423 = vmatpush1.bf16.msra.mxu0 %v384
  %424 = vmatprep.subr.bf16.mxu0 0
  %425 = vmatpush1.bf16.msra.mxu0 %v385
  %426 = vmatprep.subr.bf16.mxu0 0
  %427 = vmatpush1.bf16.msra.mxu0 %v386
  %428 = vmatprep.subr.bf16.mxu0 0
  %429 = vmatpush1.bf16.msra.mxu0 %v387
  %430 = vmatprep.subr.bf16.mxu0 0
  %431 = vmatpush1.bf16.msra.mxu0 %v388
  %432 = vmatprep.subr.bf16.mxu0 0
  %433 = vmatpush1.bf16.msra.mxu0 %v389
  %434 = vmatprep.subr.bf16.mxu0 0
  %435 = vmatpush1.bf16.msra.mxu0 %v390
  %436 = vmatprep.subr.bf16.mxu0 0
  %437 = vmatpush1.bf16.msra.mxu0 %v391
  %438 = vmatprep.subr.bf16.mxu0 0
  %439 = vmatpush1.bf16.msra.mxu0 %v392
  %440 = vmatprep.subr.bf16.mxu0 0
  %441 = vmatpush1.bf16.msra.mxu0 %v393
  %442 = vmatprep.mubr.bf16.mxu0 %v251
  %443 = vmatmul.mubr.bf16.gmra.mrb[0].mxu0 %v250
  %v444 = vpop.f32.mrb[0].mxu0
  %v445 = vadd.f32 0.0, %v444
  %v446 = vpop.f32.mrb[0].mxu0
  %v447 = vpop.f32.mrb[0].mxu0
  %v448 = vadd.f32 0.0, %v447
  %v449 = vpop.f32.mrb[0].mxu0
  %450 = vmatprep.mubr.bf16.mxu0 %v253
  %451 = vmatmul.mubr.bf16.gmra.mrb[0].mxu0 %v252
  %v452 = vpop.f32.mrb[0].mxu0
  %v453 = vadd.f32 0.0, %v452
  %v454 = vpop.f32.mrb[0].mxu0
  %v455 = vpop.f32.mrb[0].mxu0
  %v456 = vadd.f32 0.0, %v455
  %v457 = vpop.f32.mrb[0].mxu0
  %458 = vmatprep.mubr.bf16.mxu0 %v255
  %459 = vmatmul.mubr.bf16.gmra.mrb[0].mxu0 %v254
  %v460 = vpop.f32.mrb[0].mxu0
  %v461 = vadd.f32 0.0, %v460
  %v462 = vpop.f32.mrb[0].mxu0
  %v463 = vpop.f32.mrb[0].mxu0
  %v464 = vadd.f32 0.0, %v463
  %v465 = vpop.f32.mrb[0].mxu0
  %466 = vmatprep.mubr.bf16.mxu0 %v257
  %467 = vmatmul.mubr.bf16.gmra.mrb[0].mxu0 %v256
  %v468 = vpop.f32.mrb[0].mxu0
  %v469 = vadd.f32 0.0, %v468
  %v470 = vpop.f32.mrb[0].mxu0
  %v471 = vpop.f32.mrb[0].mxu0
  %v472 = vadd.f32 0.0, %v471
  %v473 = vpop.f32.mrb[0].mxu0
  %474 = vmatprep.mubr.bf16.mxu0 %v259
  %475 = vmatmul.mubr.bf16.gmra.mrb[0].mxu0 %v258
  %v476 = vpop.f32.mrb[0].mxu0
  %v477 = vadd.f32 0.0, %v476
  %v478 = vpop.f32.mrb[0].mxu0
  %v479 = vpop.f32.mrb[0].mxu0
  %v480 = vadd.f32 0.0, %v479
  %v481 = vpop.f32.mrb[0].mxu0
  %482 = vmatprep.mubr.bf16.mxu0 %v261
  %483 = vmatmul.mubr.bf16.gmra.mrb[0].mxu0 %v260
  %v484 = vpop.f32.mrb[0].mxu0
  %v485 = vadd.f32 0.0, %v484
  %v486 = vpop.f32.mrb[0].mxu0
  %v487 = vpop.f32.mrb[0].mxu0
  %v488 = vadd.f32 0.0, %v487
  %v489 = vpop.f32.mrb[0].mxu0
  %490 = vmatprep.mubr.bf16.mxu0 %v263
  %491 = vmatmul.mubr.bf16.gmra.mrb[0].mxu0 %v262
  %v492 = vpop.f32.mrb[0].mxu0
  %v493 = vadd.f32 0.0, %v492
  %v494 = vpop.f32.mrb[0].mxu0
  %v495 = vpop.f32.mrb[0].mxu0
  %v496 = vadd.f32 0.0, %v495
  %v497 = vpop.f32.mrb[0].mxu0
  %498 = vmatprep.mubr.bf16.mxu0 %v265
  %499 = vmatmul.mubr.bf16.gmra.mrb[0].mxu0 %v264
  %v500 = vpop.f32.mrb[0].mxu0
  %v501 = vadd.f32 0.0, %v500
  %v502 = vpop.f32.mrb[0].mxu0
  %v503 = vpop.f32.mrb[0].mxu0
  %v504 = vadd.f32 0.0, %v503
  %v505 = vpop.f32.mrb[0].mxu0
  %506 = vmatprep.mubr.bf16.mxu0 %v267
  %507 = vmatmul.mubr.bf16.gmra.mrb[0].mxu0 %v266
  %v508 = vpop.f32.mrb[0].mxu0
  %v509 = vadd.f32 0.0, %v508
  %v510 = vpop.f32.mrb[0].mxu0
  %v511 = vpop.f32.mrb[0].mxu0
  %v512 = vadd.f32 0.0, %v511
  %v513 = vpop.f32.mrb[0].mxu0
  %514 = vmatprep.mubr.bf16.mxu0 %v269
  %515 = vmatmul.mubr.bf16.gmra.mrb[0].mxu0 %v268
  %v516 = vpop.f32.mrb[0].mxu0
  %v517 = vadd.f32 0.0, %v516
  %v518 = vpop.f32.mrb[0].mxu0
  %v519 = vpop.f32.mrb[0].mxu0
  %v520 = vadd.f32 0.0, %v519
  %v521 = vpop.f32.mrb[0].mxu0
  %522 = vmatprep.mubr.bf16.mxu0 %v271
  %523 = vmatmul.mubr.bf16.gmra.mrb[0].mxu0 %v270
  %v524 = vpop.f32.mrb[0].mxu0
  %v525 = vadd.f32 0.0, %v524
  %v526 = vpop.f32.mrb[0].mxu0
  %v527 = vpop.f32.mrb[0].mxu0
  %v528 = vadd.f32 0.0, %v527
  %v529 = vpop.f32.mrb[0].mxu0
  %530 = vmatprep.mubr.bf16.mxu0 %v273
  %531 = vmatmul.mubr.bf16.gmra.mrb[0].mxu0 %v272
  %v532 = vpop.f32.mrb[0].mxu0
  %v533 = vadd.f32 0.0, %v532
  %v534 = vpop.f32.mrb[0].mxu0
  %v535 = vpop.f32.mrb[0].mxu0
  %v536 = vadd.f32 0.0, %v535
  %v537 = vpop.f32.mrb[0].mxu0
  %538 = vmatprep.mubr.bf16.mxu0 %v275
  %539 = vmatmul.mubr.bf16.gmra.mrb[0].mxu0 %v274
  %v540 = vpop.f32.mrb[0].mxu0
  %v541 = vadd.f32 0.0, %v540
  %v542 = vpop.f32.mrb[0].mxu0
  %v543 = vpop.f32.mrb[0].mxu0
  %v544 = vadd.f32 0.0, %v543
  %v545 = vpop.f32.mrb[0].mxu0
  %546 = vmatprep.mubr.bf16.mxu0 %v277
  %547 = vmatmul.mubr.bf16.gmra.mrb[0].mxu0 %v276
  %v548 = vpop.f32.mrb[0].mxu0
  %v549 = vadd.f32 0.0, %v548
  %v550 = vpop.f32.mrb[0].mxu0
  %v551 = vpop.f32.mrb[0].mxu0
  %v552 = vadd.f32 0.0, %v551
  %v553 = vpop.f32.mrb[0].mxu0
  %554 = vmatprep.mubr.bf16.mxu0 %v279
  %555 = vmatmul.mubr.bf16.gmra.mrb[0].mxu0 %v278
  %v556 = vpop.f32.mrb[0].mxu0
  %v557 = vadd.f32 0.0, %v556
  %v558 = vpop.f32.mrb[0].mxu0
  %v559 = vpop.f32.mrb[0].mxu0
  %v560 = vadd.f32 0.0, %v559
  %v561 = vpop.f32.mrb[0].mxu0
  %562 = vmatprep.mubr.bf16.mxu0 %v281
  %563 = vmatmul.mubr.bf16.gmra.mrb[0].mxu0 %v280
  %v564 = vpop.f32.mrb[0].mxu0
  %v565 = vadd.f32 0.0, %v564
  %v566 = vpop.f32.mrb[0].mxu0
  %v567 = vpop.f32.mrb[0].mxu0
  %v568 = vadd.f32 0.0, %v567
  %v569 = vpop.f32.mrb[0].mxu0
  %570 = vdwg.mxu0
  %v571 = vadd.f32 %v58, %v445
  %v572 = vadd.f32 %v59, %v448
  %v573 = vadd.f32 %v60, %v453
  %v574 = vadd.f32 %v61, %v456
  %v575 = vadd.f32 %v62, %v461
  %v576 = vadd.f32 %v63, %v464
  %v577 = vadd.f32 %v64, %v469
  %v578 = vadd.f32 %v65, %v472
  %v579 = vadd.f32 %v66, %v477
  %v580 = vadd.f32 %v67, %v480
  %v581 = vadd.f32 %v68, %v485
  %v582 = vadd.f32 %v69, %v488
  %v583 = vadd.f32 %v70, %v493
  %v584 = vadd.f32 %v71, %v496
  %v585 = vadd.f32 %v72, %v501
  %v586 = vadd.f32 %v73, %v504
  %v587 = vadd.f32 %v74, %v509
  %v588 = vadd.f32 %v75, %v512
  %v589 = vadd.f32 %v76, %v517
  %v590 = vadd.f32 %v77, %v520
  %v591 = vadd.f32 %v78, %v525
  %v592 = vadd.f32 %v79, %v528
  %v593 = vadd.f32 %v80, %v533
  %v594 = vadd.f32 %v81, %v536
  %v595 = vadd.f32 %v82, %v541
  %v596 = vadd.f32 %v83, %v544
  %v597 = vadd.f32 %v84, %v549
  %v598 = vadd.f32 %v85, %v552
  %v599 = vadd.f32 %v86, %v557
  %v600 = vadd.f32 %v87, %v560
  %v601 = vadd.f32 %v88, %v565
  %v602 = vadd.f32 %v89, %v568
  %603 = vst [vmem:[#allocation2] sm:$0xff] %v571
  %604 = vst [vmem:[#allocation2 + $0x8] sm:$0xff] %v572
  %605 = vst [vmem:[#allocation2 + $0x10] sm:$0xff] %v573
  %606 = vst [vmem:[#allocation2 + $0x18] sm:$0xff] %v574
  %607 = vst [vmem:[#allocation2 + $0x20] sm:$0xff] %v575
  %608 = vst [vmem:[#allocation2 + $0x28] sm:$0xff] %v576
  %609 = vst [vmem:[#allocation2 + $0x30] sm:$0xff] %v577
  %610 = vst [vmem:[#allocation2 + $0x38] sm:$0xff] %v578
  %611 = vst [vmem:[#allocation2 + $0x40] sm:$0xff] %v579
  %612 = vst [vmem:[#allocation2 + $0x48] sm:$0xff] %v580
  %613 = vst [vmem:[#allocation2 + $0x50] sm:$0xff] %v581
  %614 = vst [vmem:[#allocation2 + $0x58] sm:$0xff] %v582
  %615 = vst [vmem:[#allocation2 + $0x60] sm:$0xff] %v583
  %616 = vst [vmem:[#allocation2 + $0x68] sm:$0xff] %v584
  %617 = vst [vmem:[#allocation2 + $0x70] sm:$0xff] %v585
  %618 = vst [vmem:[#allocation2 + $0x78] sm:$0xff] %v586
  %619 = vst [vmem:[#allocation2 + $0x80] sm:$0xff] %v587
  %620 = vst [vmem:[#allocation2 + $0x88] sm:$0xff] %v588
  %621 = vst [vmem:[#allocation2 + $0x90] sm:$0xff] %v589
  %622 = vst [vmem:[#allocation2 + $0x98] sm:$0xff] %v590
  %623 = vst [vmem:[#allocation2 + $0xa0] sm:$0xff] %v591
  %624 = vst [vmem:[#allocation2 + $0xa8] sm:$0xff] %v592
  %625 = vst [vmem:[#allocation2 + $0xb0] sm:$0xff] %v593
  %626 = vst [vmem:[#allocation2 + $0xb8] sm:$0xff] %v594
  %627 = vst [vmem:[#allocation2 + $0xc0] sm:$0xff] %v595
  %628 = vst [vmem:[#allocation2 + $0xc8] sm:$0xff] %v596
  %629 = vst [vmem:[#allocation2 + $0xd0] sm:$0xff] %v597
  %630 = vst [vmem:[#allocation2 + $0xd8] sm:$0xff] %v598
  %631 = vst [vmem:[#allocation2 + $0xe0] sm:$0xff] %v599
  %632 = vst [vmem:[#allocation2 + $0xe8] sm:$0xff] %v600
  %633 = vst [vmem:[#allocation2 + $0xf0] sm:$0xff] %v601
  %634 = vst [vmem:[#allocation2 + $0xf8] sm:$0xff] %v602
  // Predicated region
  $region18: #{gcn_layer_forward.3} parent=0 // pred_check
    %p635 = pneg %p15
  $region19: #{gcn_layer_forward.3} parent=0 // pred_check_branch
    %637 = sbr.rel (%p635) target = $region21
  $region20: #{gcn_layer_forward.3} parent=0 // pred_region
    %v638 = vld [vmem:[#allocation2] sm:$0xff]
    %v639 = vld [vmem:[#allocation2 + $0x8] sm:$0xff]
    %v640 = vld [vmem:[#allocation2 + $0x10] sm:$0xff]
    %v641 = vld [vmem:[#allocation2 + $0x18] sm:$0xff]
    %v642 = vld [vmem:[#allocation2 + $0x20] sm:$0xff]
    %v643 = vld [vmem:[#allocation2 + $0x28] sm:$0xff]
    %v644 = vld [vmem:[#allocation2 + $0x30] sm:$0xff]
    %v645 = vld [vmem:[#allocation2 + $0x38] sm:$0xff]
    %v646 = vld [vmem:[#allocation2 + $0x40] sm:$0xff]
    %v647 = vld [vmem:[#allocation2 + $0x48] sm:$0xff]
    %v648 = vld [vmem:[#allocation2 + $0x50] sm:$0xff]
    %v649 = vld [vmem:[#allocation2 + $0x58] sm:$0xff]
    %v650 = vld [vmem:[#allocation2 + $0x60] sm:$0xff]
    %v651 = vld [vmem:[#allocation2 + $0x68] sm:$0xff]
    %v652 = vld [vmem:[#allocation2 + $0x70] sm:$0xff]
    %v653 = vld [vmem:[#allocation2 + $0x78] sm:$0xff]
    %v654 = vld [vmem:[#allocation2 + $0x80] sm:$0xff]
    %v655 = vld [vmem:[#allocation2 + $0x88] sm:$0xff]
    %v656 = vld [vmem:[#allocation2 + $0x90] sm:$0xff]
    %v657 = vld [vmem:[#allocation2 + $0x98] sm:$0xff]
    %v658 = vld [vmem:[#allocation2 + $0xa0] sm:$0xff]
    %v659 = vld [vmem:[#allocation2 + $0xa8] sm:$0xff]
    %v660 = vld [vmem:[#allocation2 + $0xb0] sm:$0xff]
    %v661 = vld [vmem:[#allocation2 + $0xb8] sm:$0xff]
    %v662 = vld [vmem:[#allocation2 + $0xc0] sm:$0xff]
    %v663 = vld [vmem:[#allocation2 + $0xc8] sm:$0xff]
    %v664 = vld [vmem:[#allocation2 + $0xd0] sm:$0xff]
    %v665 = vld [vmem:[#allocation2 + $0xd8] sm:$0xff]
    %v666 = vld [vmem:[#allocation2 + $0xe0] sm:$0xff]
    %v667 = vld [vmem:[#allocation2 + $0xe8] sm:$0xff]
    %v668 = vld [vmem:[#allocation2 + $0xf0] sm:$0xff]
    %v669 = vld [vmem:[#allocation2 + $0xf8] sm:$0xff]
    %670 = vst [vmem:[%s3] sm:$0xff] %v638
    %671 = vst [vmem:[%s3 + $0x8] sm:$0xff] %v639
    %672 = vst [vmem:[%s3 + $0x10] sm:$0xff] %v640
    %673 = vst [vmem:[%s3 + $0x18] sm:$0xff] %v641
    %674 = vst [vmem:[%s3 + $0x20] sm:$0xff] %v642
    %675 = vst [vmem:[%s3 + $0x28] sm:$0xff] %v643
    %676 = vst [vmem:[%s3 + $0x30] sm:$0xff] %v644
    %677 = vst [vmem:[%s3 + $0x38] sm:$0xff] %v645
    %678 = vst [vmem:[%s3 + $0x40] sm:$0xff] %v646
    %679 = vst [vmem:[%s3 + $0x48] sm:$0xff] %v647
    %680 = vst [vmem:[%s3 + $0x50] sm:$0xff] %v648
    %681 = vst [vmem:[%s3 + $0x58] sm:$0xff] %v649
    %682 = vst [vmem:[%s3 + $0x60] sm:$0xff] %v650
    %683 = vst [vmem:[%s3 + $0x68] sm:$0xff] %v651
    %684 = vst [vmem:[%s3 + $0x70] sm:$0xff] %v652
    %685 = vst [vmem:[%s3 + $0x78] sm:$0xff] %v653
    %686 = vst [vmem:[%s3 + $0x80] sm:$0xff] %v654
    %687 = vst [vmem:[%s3 + $0x88] sm:$0xff] %v655
    %688 = vst [vmem:[%s3 + $0x90] sm:$0xff] %v656
    %689 = vst [vmem:[%s3 + $0x98] sm:$0xff] %v657
    %690 = vst [vmem:[%s3 + $0xa0] sm:$0xff] %v658
    %691 = vst [vmem:[%s3 + $0xa8] sm:$0xff] %v659
    %692 = vst [vmem:[%s3 + $0xb0] sm:$0xff] %v660
    %693 = vst [vmem:[%s3 + $0xb8] sm:$0xff] %v661
    %694 = vst [vmem:[%s3 + $0xc0] sm:$0xff] %v662
    %695 = vst [vmem:[%s3 + $0xc8] sm:$0xff] %v663
    %696 = vst [vmem:[%s3 + $0xd0] sm:$0xff] %v664
    %697 = vst [vmem:[%s3 + $0xd8] sm:$0xff] %v665
    %698 = vst [vmem:[%s3 + $0xe0] sm:$0xff] %v666
    %699 = vst [vmem:[%s3 + $0xe8] sm:$0xff] %v667
    %700 = vst [vmem:[%s3 + $0xf0] sm:$0xff] %v668
    %701 = vst [vmem:[%s3 + $0xf8] sm:$0xff] %v669
  $region21: #{gcn_layer_forward.3} parent=0 // pred_fallthru
    _
  // Predicated region
  $region22: #{gcn_layer_forward.3} parent=0 // pred_check
    _
  $region23: #{gcn_layer_forward.3} parent=0 // pred_check_branch
    %703 = sbr.rel (0) target = $region25
  $region24: #{gcn_layer_forward.3} parent=0 // pred_region
    _
  $region25: #{gcn_layer_forward.3} parent=0 // pred_fallthru
    _
  // Predicated region
  $region26: #{gcn_layer_forward.3} parent=0 // pred_check
    _
  $region27: #{gcn_layer_forward.3} parent=0 // pred_check_branch
    %705 = sbr.rel (0) target = $region29
  $region28: #{gcn_layer_forward.3} parent=0 // pred_region
    _
  $region29: #{gcn_layer_forward.3} parent=0 // pred_fallthru
    _

// kernel: gcn_layer_forward.2
$region0: #{gcn_layer_forward.2}
  #allocation0 [shape = 'u32[]', space=smem, size = 0x4, offset = 0x4, fixed_abs, tag = 'smem constant byte address 0x4 - core index']
  #allocation1 [shape = 'u32[144,128]{1,0:T(1,128)}', space=vmem, size = 0x12000, scoped, tag = 'internal scratch']
  %s0 = inlined_call_operand.vmem [shape: bf16[256,128], index: 0, kind: input, shape index: {}]
  %s1 = inlined_call_operand.vmem [shape: bf16[128,128], index: 1, kind: input, shape index: {}]
  %s2 = inlined_call_operand.vmem [shape: bf16[256,128], index: 2, kind: output, shape index: {}]
  %s3 = sld [smem:[#allocation0]]
  $region18: #{gcn_layer_forward.2} parent=0
    _
  %s5 = ssub.s32 1, %s3
  %s6 = scalar_select 0, %s5, %s3
  // Predicated region
  $region2: #{gcn_layer_forward.2} parent=0 // pred_check
    _
  $region3: #{gcn_layer_forward.2} parent=0 // pred_check_branch
    %8 = sbr.rel (0) target = $region5
  $region4: #{gcn_layer_forward.2} parent=0 // pred_region
    _
  $region5: #{gcn_layer_forward.2} parent=0 // pred_fallthru
    _
  // Predicated region
  $region6: #{gcn_layer_forward.2} parent=0 // pred_check
    _
  $region7: #{gcn_layer_forward.2} parent=0 // pred_check_branch
    %10 = sbr.rel (0) target = $region9
  $region8: #{gcn_layer_forward.2} parent=0 // pred_region
    _
  $region9: #{gcn_layer_forward.2} parent=0 // pred_fallthru
    _
  %v12 = vld [vmem:[%s0] sm:$0xf]
  %v13 = vld [vmem:[%s0 + $0x4] sm:$0xf]
  %v14 = vld [vmem:[%s0 + $0x8] sm:$0xf]
  %v15 = vld [vmem:[%s0 + $0xc] sm:$0xf]
  %v16 = vld [vmem:[%s0 + $0x10] sm:$0xf]
  %v17 = vld [vmem:[%s0 + $0x14] sm:$0xf]
  %v18 = vld [vmem:[%s0 + $0x18] sm:$0xf]
  %v19 = vld [vmem:[%s0 + $0x1c] sm:$0xf]
  %v20 = vld [vmem:[%s0 + $0x20] sm:$0xf]
  %v21 = vld [vmem:[%s0 + $0x24] sm:$0xf]
  %v22 = vld [vmem:[%s0 + $0x28] sm:$0xf]
  %v23 = vld [vmem:[%s0 + $0x2c] sm:$0xf]
  %v24 = vld [vmem:[%s0 + $0x30] sm:$0xf]
  %v25 = vld [vmem:[%s0 + $0x34] sm:$0xf]
  %v26 = vld [vmem:[%s0 + $0x38] sm:$0xf]
  %v27 = vld [vmem:[%s0 + $0x3c] sm:$0xf]
  %v28 = vld [vmem:[%s0 + $0x40] sm:$0xf]
  %v29 = vld [vmem:[%s0 + $0x44] sm:$0xf]
  %v30 = vld [vmem:[%s0 + $0x48] sm:$0xf]
  %v31 = vld [vmem:[%s0 + $0x4c] sm:$0xf]
  %v32 = vld [vmem:[%s0 + $0x50] sm:$0xf]
  %v33 = vld [vmem:[%s0 + $0x54] sm:$0xf]
  %v34 = vld [vmem:[%s0 + $0x58] sm:$0xf]
  %v35 = vld [vmem:[%s0 + $0x5c] sm:$0xf]
  %v36 = vld [vmem:[%s0 + $0x60] sm:$0xf]
  %v37 = vld [vmem:[%s0 + $0x64] sm:$0xf]
  %v38 = vld [vmem:[%s0 + $0x68] sm:$0xf]
  %v39 = vld [vmem:[%s0 + $0x6c] sm:$0xf]
  %v40 = vld [vmem:[%s0 + $0x70] sm:$0xf]
  %v41 = vld [vmem:[%s0 + $0x74] sm:$0xf]
  %v42 = vld [vmem:[%s0 + $0x78] sm:$0xf]
  %v43 = vld [vmem:[%s0 + $0x7c] sm:$0xf]
  %v44 = vld [vmem:[%s1] sm:$0xf]
  %v45 = vld [vmem:[%s1 + $0x4] sm:$0xf]
  %v46 = vld [vmem:[%s1 + $0x8] sm:$0xf]
  %v47 = vld [vmem:[%s1 + $0xc] sm:$0xf]
  %v48 = vld [vmem:[%s1 + $0x10] sm:$0xf]
  %v49 = vld [vmem:[%s1 + $0x14] sm:$0xf]
  %v50 = vld [vmem:[%s1 + $0x18] sm:$0xf]
  %v51 = vld [vmem:[%s1 + $0x1c] sm:$0xf]
  %v52 = vld [vmem:[%s1 + $0x20] sm:$0xf]
  %v53 = vld [vmem:[%s1 + $0x24] sm:$0xf]
  %v54 = vld [vmem:[%s1 + $0x28] sm:$0xf]
  %v55 = vld [vmem:[%s1 + $0x2c] sm:$0xf]
  %v56 = vld [vmem:[%s1 + $0x30] sm:$0xf]
  %v57 = vld [vmem:[%s1 + $0x34] sm:$0xf]
  %v58 = vld [vmem:[%s1 + $0x38] sm:$0xf]
  %v59 = vld [vmem:[%s1 + $0x3c] sm:$0xf]
  %v92 = vunpack.c.l.b16 %v12
  %v93 = vunpack.c.l.b16 %v13
  %v94 = vunpack.c.l.b16 %v14
  %v95 = vunpack.c.l.b16 %v15
  %v96 = vunpack.c.l.b16 %v16
  %v97 = vunpack.c.l.b16 %v17
  %v98 = vunpack.c.l.b16 %v18
  %v99 = vunpack.c.l.b16 %v19
  %v100 = vunpack.c.l.b16 %v20
  %v101 = vunpack.c.l.b16 %v21
  %v102 = vunpack.c.l.b16 %v22
  %v103 = vunpack.c.l.b16 %v23
  %v104 = vunpack.c.l.b16 %v24
  %v105 = vunpack.c.l.b16 %v25
  %v106 = vunpack.c.l.b16 %v26
  %v107 = vunpack.c.l.b16 %v27
  %v108 = vunpack.c.l.b16 %v28
  %v109 = vunpack.c.l.b16 %v29
  %v110 = vunpack.c.l.b16 %v30
  %v111 = vunpack.c.l.b16 %v31
  %v112 = vunpack.c.l.b16 %v32
  %v113 = vunpack.c.l.b16 %v33
  %v114 = vunpack.c.l.b16 %v34
  %v115 = vunpack.c.l.b16 %v35
  %v116 = vunpack.c.l.b16 %v36
  %v117 = vunpack.c.l.b16 %v37
  %v118 = vunpack.c.l.b16 %v38
  %v119 = vunpack.c.l.b16 %v39
  %v120 = vunpack.c.l.b16 %v40
  %v121 = vunpack.c.l.b16 %v41
  %v122 = vunpack.c.l.b16 %v42
  %v123 = vunpack.c.l.b16 %v43
  %v124 = vpack.c.b16 %v93, %v92
  %v125 = vpack.c.b16 %v95, %v94
  %v126 = vpack.c.b16 %v97, %v96
  %v127 = vpack.c.b16 %v99, %v98
  %v128 = vpack.c.b16 %v101, %v100
  %v129 = vpack.c.b16 %v103, %v102
  %v130 = vpack.c.b16 %v105, %v104
  %v131 = vpack.c.b16 %v107, %v106
  %v132 = vpack.c.b16 %v109, %v108
  %v133 = vpack.c.b16 %v111, %v110
  %v134 = vpack.c.b16 %v113, %v112
  %v135 = vpack.c.b16 %v115, %v114
  %v136 = vpack.c.b16 %v117, %v116
  %v137 = vpack.c.b16 %v119, %v118
  %v138 = vpack.c.b16 %v121, %v120
  %v139 = vpack.c.b16 %v123, %v122
  %v172 = vunpack.c.l.b16 %v44
  %v173 = vunpack.c.l.b16 %v45
  %v174 = vunpack.c.l.b16 %v46
  %v175 = vunpack.c.l.b16 %v47
  %v176 = vunpack.c.l.b16 %v48
  %v177 = vunpack.c.l.b16 %v49
  %v178 = vunpack.c.l.b16 %v50
  %v179 = vunpack.c.l.b16 %v51
  %v180 = vunpack.c.l.b16 %v52
  %v181 = vunpack.c.l.b16 %v53
  %v182 = vunpack.c.l.b16 %v54
  %v183 = vunpack.c.l.b16 %v55
  %v184 = vunpack.c.l.b16 %v56
  %v185 = vunpack.c.l.b16 %v57
  %v186 = vunpack.c.l.b16 %v58
  %v187 = vunpack.c.l.b16 %v59
  %v188 = vpack.c.b16 %v173, %v172
  %v189 = vpack.c.b16 %v175, %v174
  %v190 = vpack.c.b16 %v177, %v176
  %v191 = vpack.c.b16 %v179, %v178
  %v192 = vpack.c.b16 %v181, %v180
  %v193 = vpack.c.b16 %v183, %v182
  %v194 = vpack.c.b16 %v185, %v184
  %v195 = vpack.c.b16 %v187, %v186
  %204 = vmatprep.subr.bf16.mxu0 0
  %205 = vmatpush1.bf16.msra.mxu0 %v188
  %206 = vmatprep.subr.bf16.mxu0 0
  %207 = vmatpush1.bf16.msra.mxu0 %v189
  %208 = vmatprep.subr.bf16.mxu0 0
  %209 = vmatpush1.bf16.msra.mxu0 %v190
  %210 = vmatprep.subr.bf16.mxu0 0
  %211 = vmatpush1.bf16.msra.mxu0 %v191
  %212 = vmatprep.subr.bf16.mxu0 0
  %213 = vmatpush1.bf16.msra.mxu0 %v192
  %214 = vmatprep.subr.bf16.mxu0 0
  %215 = vmatpush1.bf16.msra.mxu0 %v193
  %216 = vmatprep.subr.bf16.mxu0 0
  %217 = vmatpush1.bf16.msra.mxu0 %v194
  %218 = vmatprep.subr.bf16.mxu0 0
  %219 = vmatpush1.bf16.msra.mxu0 %v195
  %220 = vmatprep.subr.bf16.mxu0 0
  %221 = vmatpush1.bf16.msra.mxu0 0
  %222 = vmatprep.subr.bf16.mxu0 0
  %223 = vmatpush1.bf16.msra.mxu0 0
  %224 = vmatprep.subr.bf16.mxu0 0
  %225 = vmatpush1.bf16.msra.mxu0 0
  %226 = vmatprep.subr.bf16.mxu0 0
  %227 = vmatpush1.bf16.msra.mxu0 0
  %228 = vmatprep.subr.bf16.mxu0 0
  %229 = vmatpush1.bf16.msra.mxu0 0
  %230 = vmatprep.subr.bf16.mxu0 0
  %231 = vmatpush1.bf16.msra.mxu0 0
  %232 = vmatprep.subr.bf16.mxu0 0
  %233 = vmatpush1.bf16.msra.mxu0 0
  %234 = vmatprep.subr.bf16.mxu0 0
  %235 = vmatpush1.bf16.msra.mxu0 0
  %236 = vmatprep.mubr.bf16.mxu0 0
  %237 = vmatmul.mubr.bf16.gmra.mrb[0].mxu0 %v124
  %v238 = vpop.f32.mrb[0].mxu0
  %v239 = vadd.f32 0.0, %v238
  %v240 = vpop.f32.mrb[0].mxu0
  %v241 = vpop.f32.mrb[0].mxu0
  %v242 = vadd.f32 0.0, %v241
  %v243 = vpop.f32.mrb[0].mxu0
  %244 = vmatprep.mubr.bf16.mxu0 0
  %245 = vmatmul.mubr.bf16.gmra.mrb[0].mxu0 %v125
  %v246 = vpop.f32.mrb[0].mxu0
  %v247 = vadd.f32 0.0, %v246
  %v248 = vpop.f32.mrb[0].mxu0
  %v249 = vpop.f32.mrb[0].mxu0
  %v250 = vadd.f32 0.0, %v249
  %v251 = vpop.f32.mrb[0].mxu0
  %252 = vmatprep.mubr.bf16.mxu0 0
  %253 = vmatmul.mubr.bf16.gmra.mrb[0].mxu0 %v126
  %v254 = vpop.f32.mrb[0].mxu0
  %v255 = vadd.f32 0.0, %v254
  %v256 = vpop.f32.mrb[0].mxu0
  %v257 = vpop.f32.mrb[0].mxu0
  %v258 = vadd.f32 0.0, %v257
  %v259 = vpop.f32.mrb[0].mxu0
  %260 = vmatprep.mubr.bf16.mxu0 0
  %261 = vmatmul.mubr.bf16.gmra.mrb[0].mxu0 %v127
  %v262 = vpop.f32.mrb[0].mxu0
  %v263 = vadd.f32 0.0, %v262
  %v264 = vpop.f32.mrb[0].mxu0
  %v265 = vpop.f32.mrb[0].mxu0
  %v266 = vadd.f32 0.0, %v265
  %v267 = vpop.f32.mrb[0].mxu0
  %268 = vmatprep.mubr.bf16.mxu0 0
  %269 = vmatmul.mubr.bf16.gmra.mrb[0].mxu0 %v128
  %v270 = vpop.f32.mrb[0].mxu0
  %v271 = vadd.f32 0.0, %v270
  %v272 = vpop.f32.mrb[0].mxu0
  %v273 = vpop.f32.mrb[0].mxu0
  %v274 = vadd.f32 0.0, %v273
  %v275 = vpop.f32.mrb[0].mxu0
  %276 = vmatprep.mubr.bf16.mxu0 0
  %277 = vmatmul.mubr.bf16.gmra.mrb[0].mxu0 %v129
  %v278 = vpop.f32.mrb[0].mxu0
  %v279 = vadd.f32 0.0, %v278
  %v280 = vpop.f32.mrb[0].mxu0
  %v281 = vpop.f32.mrb[0].mxu0
  %v282 = vadd.f32 0.0, %v281
  %v283 = vpop.f32.mrb[0].mxu0
  %284 = vmatprep.mubr.bf16.mxu0 0
  %285 = vmatmul.mubr.bf16.gmra.mrb[0].mxu0 %v130
  %v286 = vpop.f32.mrb[0].mxu0
  %v287 = vadd.f32 0.0, %v286
  %v288 = vpop.f32.mrb[0].mxu0
  %v289 = vpop.f32.mrb[0].mxu0
  %v290 = vadd.f32 0.0, %v289
  %v291 = vpop.f32.mrb[0].mxu0
  %292 = vmatprep.mubr.bf16.mxu0 0
  %293 = vmatmul.mubr.bf16.gmra.mrb[0].mxu0 %v131
  %v294 = vpop.f32.mrb[0].mxu0
  %v295 = vadd.f32 0.0, %v294
  %v296 = vpop.f32.mrb[0].mxu0
  %v297 = vpop.f32.mrb[0].mxu0
  %v298 = vadd.f32 0.0, %v297
  %v299 = vpop.f32.mrb[0].mxu0
  %300 = vmatprep.mubr.bf16.mxu0 0
  %301 = vmatmul.mubr.bf16.gmra.mrb[0].mxu0 %v132
  %v302 = vpop.f32.mrb[0].mxu0
  %v303 = vadd.f32 0.0, %v302
  %v304 = vpop.f32.mrb[0].mxu0
  %v305 = vpop.f32.mrb[0].mxu0
  %v306 = vadd.f32 0.0, %v305
  %v307 = vpop.f32.mrb[0].mxu0
  %308 = vmatprep.mubr.bf16.mxu0 0
  %309 = vmatmul.mubr.bf16.gmra.mrb[0].mxu0 %v133
  %v310 = vpop.f32.mrb[0].mxu0
  %v311 = vadd.f32 0.0, %v310
  %v312 = vpop.f32.mrb[0].mxu0
  %v313 = vpop.f32.mrb[0].mxu0
  %v314 = vadd.f32 0.0, %v313
  %v315 = vpop.f32.mrb[0].mxu0
  %316 = vmatprep.mubr.bf16.mxu0 0
  %317 = vmatmul.mubr.bf16.gmra.mrb[0].mxu0 %v134
  %v318 = vpop.f32.mrb[0].mxu0
  %v319 = vadd.f32 0.0, %v318
  %v320 = vpop.f32.mrb[0].mxu0
  %v321 = vpop.f32.mrb[0].mxu0
  %v322 = vadd.f32 0.0, %v321
  %v323 = vpop.f32.mrb[0].mxu0
  %324 = vmatprep.mubr.bf16.mxu0 0
  %325 = vmatmul.mubr.bf16.gmra.mrb[0].mxu0 %v135
  %v326 = vpop.f32.mrb[0].mxu0
  %v327 = vadd.f32 0.0, %v326
  %v328 = vpop.f32.mrb[0].mxu0
  %v329 = vpop.f32.mrb[0].mxu0
  %v330 = vadd.f32 0.0, %v329
  %v331 = vpop.f32.mrb[0].mxu0
  %332 = vmatprep.mubr.bf16.mxu0 0
  %333 = vmatmul.mubr.bf16.gmra.mrb[0].mxu0 %v136
  %v334 = vpop.f32.mrb[0].mxu0
  %v335 = vadd.f32 0.0, %v334
  %v336 = vpop.f32.mrb[0].mxu0
  %v337 = vpop.f32.mrb[0].mxu0
  %v338 = vadd.f32 0.0, %v337
  %v339 = vpop.f32.mrb[0].mxu0
  %340 = vmatprep.mubr.bf16.mxu0 0
  %341 = vmatmul.mubr.bf16.gmra.mrb[0].mxu0 %v137
  %v342 = vpop.f32.mrb[0].mxu0
  %v343 = vadd.f32 0.0, %v342
  %v344 = vpop.f32.mrb[0].mxu0
  %v345 = vpop.f32.mrb[0].mxu0
  %v346 = vadd.f32 0.0, %v345
  %v347 = vpop.f32.mrb[0].mxu0
  %348 = vmatprep.mubr.bf16.mxu0 0
  %349 = vmatmul.mubr.bf16.gmra.mrb[0].mxu0 %v138
  %v350 = vpop.f32.mrb[0].mxu0
  %v351 = vadd.f32 0.0, %v350
  %v352 = vpop.f32.mrb[0].mxu0
  %v353 = vpop.f32.mrb[0].mxu0
  %v354 = vadd.f32 0.0, %v353
  %v355 = vpop.f32.mrb[0].mxu0
  %356 = vmatprep.mubr.bf16.mxu0 0
  %357 = vmatmul.mubr.bf16.gmra.mrb[0].mxu0 %v139
  %v358 = vpop.f32.mrb[0].mxu0
  %v359 = vadd.f32 0.0, %v358
  %v360 = vpop.f32.mrb[0].mxu0
  %v361 = vpop.f32.mrb[0].mxu0
  %v362 = vadd.f32 0.0, %v361
  %v363 = vpop.f32.mrb[0].mxu0
  %364 = vdwg.mxu0
  %v365 = vpack.c.bf16 %v242, %v239
  %v366 = vpack.c.bf16 %v250, %v247
  %v367 = vpack.c.bf16 %v258, %v255
  %v368 = vpack.c.bf16 %v266, %v263
  %v369 = vpack.c.bf16 %v274, %v271
  %v370 = vpack.c.bf16 %v282, %v279
  %v371 = vpack.c.bf16 %v290, %v287
  %v372 = vpack.c.bf16 %v298, %v295
  %v373 = vpack.c.bf16 %v306, %v303
  %v374 = vpack.c.bf16 %v314, %v311
  %v375 = vpack.c.bf16 %v322, %v319
  %v376 = vpack.c.bf16 %v330, %v327
  %v377 = vpack.c.bf16 %v338, %v335
  %v378 = vpack.c.bf16 %v346, %v343
  %v379 = vpack.c.bf16 %v354, %v351
  %v380 = vpack.c.bf16 %v362, %v359
  %v397 = vunpack.c.l.b16 %v365
  %v398 = vunpack.c.h.b16 %v365
  %v399 = vunpack.c.l.b16 %v366
  %v400 = vunpack.c.h.b16 %v366
  %v401 = vunpack.c.l.b16 %v367
  %v402 = vunpack.c.h.b16 %v367
  %v403 = vunpack.c.l.b16 %v368
  %v404 = vunpack.c.h.b16 %v368
  %v405 = vunpack.c.l.b16 %v369
  %v406 = vunpack.c.h.b16 %v369
  %v407 = vunpack.c.l.b16 %v370
  %v408 = vunpack.c.h.b16 %v370
  %v409 = vunpack.c.l.b16 %v371
  %v410 = vunpack.c.h.b16 %v371
  %v411 = vunpack.c.l.b16 %v372
  %v412 = vunpack.c.h.b16 %v372
  %v413 = vunpack.c.l.b16 %v373
  %v414 = vunpack.c.h.b16 %v373
  %v415 = vunpack.c.l.b16 %v374
  %v416 = vunpack.c.h.b16 %v374
  %v417 = vunpack.c.l.b16 %v375
  %v418 = vunpack.c.h.b16 %v375
  %v419 = vunpack.c.l.b16 %v376
  %v420 = vunpack.c.h.b16 %v376
  %v421 = vunpack.c.l.b16 %v377
  %v422 = vunpack.c.h.b16 %v377
  %v423 = vunpack.c.l.b16 %v378
  %v424 = vunpack.c.h.b16 %v378
  %v425 = vunpack.c.l.b16 %v379
  %v426 = vunpack.c.h.b16 %v379
  %v427 = vunpack.c.l.b16 %v380
  %v428 = vunpack.c.h.b16 %v380
  %v429 = vpack.c.b16 %v397, %v397
  %v430 = vpack.c.b16 %v398, %v398
  %v431 = vpack.c.b16 %v399, %v399
  %v432 = vpack.c.b16 %v400, %v400
  %v433 = vpack.c.b16 %v401, %v401
  %v434 = vpack.c.b16 %v402, %v402
  %v435 = vpack.c.b16 %v403, %v403
  %v436 = vpack.c.b16 %v404, %v404
  %v437 = vpack.c.b16 %v405, %v405
  %v438 = vpack.c.b16 %v406, %v406
  %v439 = vpack.c.b16 %v407, %v407
  %v440 = vpack.c.b16 %v408, %v408
  %v441 = vpack.c.b16 %v409, %v409
  %v442 = vpack.c.b16 %v410, %v410
  %v443 = vpack.c.b16 %v411, %v411
  %v444 = vpack.c.b16 %v412, %v412
  %v445 = vpack.c.b16 %v413, %v413
  %v446 = vpack.c.b16 %v414, %v414
  %v447 = vpack.c.b16 %v415, %v415
  %v448 = vpack.c.b16 %v416, %v416
  %v449 = vpack.c.b16 %v417, %v417
  %v450 = vpack.c.b16 %v418, %v418
  %v451 = vpack.c.b16 %v419, %v419
  %v452 = vpack.c.b16 %v420, %v420
  %v453 = vpack.c.b16 %v421, %v421
  %v454 = vpack.c.b16 %v422, %v422
  %v455 = vpack.c.b16 %v423, %v423
  %v456 = vpack.c.b16 %v424, %v424
  %v457 = vpack.c.b16 %v425, %v425
  %v458 = vpack.c.b16 %v426, %v426
  %v459 = vpack.c.b16 %v427, %v427
  %v460 = vpack.c.b16 %v428, %v428
  %493 = vst [vmem:[%s2] sm:$0xf] %v429
  %494 = vst [vmem:[%s2 + $0x4] sm:$0xf] %v430
  %495 = vst [vmem:[%s2 + $0x8] sm:$0xf] %v431
  %496 = vst [vmem:[%s2 + $0xc] sm:$0xf] %v432
  %497 = vst [vmem:[%s2 + $0x10] sm:$0xf] %v433
  %498 = vst [vmem:[%s2 + $0x14] sm:$0xf] %v434
  %499 = vst [vmem:[%s2 + $0x18] sm:$0xf] %v435
  %500 = vst [vmem:[%s2 + $0x1c] sm:$0xf] %v436
  %501 = vst [vmem:[%s2 + $0x20] sm:$0xf] %v437
  %502 = vst [vmem:[%s2 + $0x24] sm:$0xf] %v438
  %503 = vst [vmem:[%s2 + $0x28] sm:$0xf] %v439
  %504 = vst [vmem:[%s2 + $0x2c] sm:$0xf] %v440
  %505 = vst [vmem:[%s2 + $0x30] sm:$0xf] %v441
  %506 = vst [vmem:[%s2 + $0x34] sm:$0xf] %v442
  %507 = vst [vmem:[%s2 + $0x38] sm:$0xf] %v443
  %508 = vst [vmem:[%s2 + $0x3c] sm:$0xf] %v444
  %509 = vst [vmem:[%s2 + $0x40] sm:$0xf] %v445
  %510 = vst [vmem:[%s2 + $0x44] sm:$0xf] %v446
  %511 = vst [vmem:[%s2 + $0x48] sm:$0xf] %v447
  %512 = vst [vmem:[%s2 + $0x4c] sm:$0xf] %v448
  %513 = vst [vmem:[%s2 + $0x50] sm:$0xf] %v449
  %514 = vst [vmem:[%s2 + $0x54] sm:$0xf] %v450
  %515 = vst [vmem:[%s2 + $0x58] sm:$0xf] %v451
  %516 = vst [vmem:[%s2 + $0x5c] sm:$0xf] %v452
  %517 = vst [vmem:[%s2 + $0x60] sm:$0xf] %v453
  %518 = vst [vmem:[%s2 + $0x64] sm:$0xf] %v454
  %519 = vst [vmem:[%s2 + $0x68] sm:$0xf] %v455
  %520 = vst [vmem:[%s2 + $0x6c] sm:$0xf] %v456
  %521 = vst [vmem:[%s2 + $0x70] sm:$0xf] %v457
  %522 = vst [vmem:[%s2 + $0x74] sm:$0xf] %v458
  %523 = vst [vmem:[%s2 + $0x78] sm:$0xf] %v459
  %524 = vst [vmem:[%s2 + $0x7c] sm:$0xf] %v460
  // Predicated region
  $region10: #{gcn_layer_forward.2} parent=0 // pred_check
    _
  $region11: #{gcn_layer_forward.2} parent=0 // pred_check_branch
    %526 = sbr.rel (0) target = $region13
  $region12: #{gcn_layer_forward.2} parent=0 // pred_region
    _
  $region13: #{gcn_layer_forward.2} parent=0 // pred_fallthru
    _
  // Predicated region
  $region14: #{gcn_layer_forward.2} parent=0 // pred_check
    _
  $region15: #{gcn_layer_forward.2} parent=0 // pred_check_branch
    %528 = sbr.rel (0) target = $region17
  $region16: #{gcn_layer_forward.2} parent=0 // pred_region
    _
  $region17: #{gcn_layer_forward.2} parent=0 // pred_fallthru
    _

</llo_original>
